<compile_context>
chip_gen: v7x
topology: tpu7x:2x2x1
jax: 0.10.0
libtpu: 0.0.40
codegen_flags: <defaults>
</compile_context>

<pallas_src>
import jax
import jax.numpy as jnp
from jax.experimental import pallas as pl
from jax.experimental.pallas import tpu as pltpu

# ----------------------------- model hyper-params -----------------------------
B = 2                 # batch size for the demo
PLAYER_INFO_DIM = 8
CARD_INFO_DIM = 6
EFFECT_INFO_DIM = 3
D_MODEL = 32
MAX_CARDS = 5
MAX_EFFECTS = 4
CARD_FEAT = CARD_INFO_DIM + MAX_EFFECTS * EFFECT_INFO_DIM   # 18
CF = MAX_CARDS * CARD_FEAT                                   # 90
CD = MAX_CARDS * D_MODEL                                     # 160

# fused-layout constants
X_COLS = CF + PLAYER_INFO_DIM + 1   # 99  = [cards | player | ones]
PE_OFF = 0                           # pe block at lanes 0:32
CARD_OFF = 128                       # card block starts on a lane-tile boundary
ONE_COL = CARD_OFF + CD              # 288: constant-1 indicator lane
S_COLS = 320                         # stage-1 output width (pad to clean lane count)
H_OFF = CARD_OFF                     # ReLU'd slice start
H_COLS = S_COLS - CARD_OFF           # 192 = 160 card lanes + 1 indicator + 31 zero pad

WEIGHT_DTYPE = jnp.bfloat16          # MXU-native on v6e/v7x; f32 accumulation kept


# --------------------------------- kernel -------------------------------------
def game_layer_kernel(x_ref, w1_ref, w2_ref, out_ref):
    """x: (tb, 99) = [cards|player|1];  w1: (99, 320) fused stage-1 weight;
    w2: (192, 32) fused game-MLP weight (+ bias row);  out: (tb, 32)."""
    f32 = jnp.float32

    # stage 1: one MXU push covers player embedding + full pre-ReLU card path
    s = jnp.dot(x_ref[...], w1_ref[...], preferred_element_type=f32)   # (tb, 320)

    pe = s[:, PE_OFF:PE_OFF + D_MODEL]                                  # (tb, 32)
    h = jnp.maximum(s[:, H_OFF:H_OFF + H_COLS], 0.0)                    # (tb, 192)
    # h[:, 160] == relu(1) == 1 -> multiplies the b_mlp row of w2.

    # stage 2: game MLP over concatenated card embeddings (bias folded into w2)
    m = jnp.dot(h.astype(w2_ref.dtype), w2_ref[...],
                preferred_element_type=f32)                             # (tb, 32)
    out_ref[...] = jnp.maximum(m, 0.0) + pe


# ------------------------- one-time parameter fusion ---------------------------
def fuse_params(p, weight_dtype=WEIGHT_DTYPE):
    """Fold all nonlinearity-free linear algebra into two weight slabs (done once)."""
    f32 = jnp.float32
    # card_feats @ [W_enc; W_eff x4] == card_info @ W_enc + sum_j eff_j @ W_eff
    w_cards = jnp.concatenate([p["w_enc"]] + [p["w_eff"]] * MAX_EFFECTS, axis=0)  # (18, 32)
    # fold the hidden layer (no nonlinearity in between)
    w_card = w_cards @ p["w_hid"]                                                 # (18, 32)
    b_card = p["b_enc"] @ p["w_hid"] + p["b_hid"]                                 # (1, 32)
    # block-diagonal over cards -> card path is one matmul on (B, 90)
    w_card_bd = jax.scipy.linalg.block_diag(*([w_card] * MAX_CARDS))              # (90, 160)
    b_card_row = jnp.tile(b_card, (1, MAX_CARDS))[0]                              # (160,)

    # ---- stage-1 fused weight W1 (99, 320) ----
    w1 = jnp.zeros((X_COLS, S_COLS), f32)
    w1 = w1.at[:CF, CARD_OFF:CARD_OFF + CD].set(w_card_bd)                        # card block
    w1 = w1.at[CF:CF + PLAYER_INFO_DIM, PE_OFF:PE_OFF + D_MODEL].set(p["w_pe"])   # pe block
    w1 = w1.at[CF + PLAYER_INFO_DIM, PE_OFF:PE_OFF + D_MODEL].set(p["b_pe"][0])   # b_pe
    w1 = w1.at[CF + PLAYER_INFO_DIM, CARD_OFF:CARD_OFF + CD].set(b_card_row)      # b_card
    w1 = w1.at[CF + PLAYER_INFO_DIM, ONE_COL].set(1.0)                            # indicator

    # ---- stage-2 fused weight W2 (192, 32) ----
    w2 = jnp.zeros((H_COLS, D_MODEL), f32)
    w2 = w2.at[:CD, :].set(p["w_mlp"].reshape(CD, D_MODEL))
    w2 = w2.at[CD, :].set(p["b_mlp"][0])                                          # bias row

    return {"w1": w1.astype(weight_dtype), "w2": w2.astype(weight_dtype)}


# --------------------------------- wrapper -------------------------------------
def _batch_tile(b):
    # Single grid point for small batches; 256-row tiles (multiple of 8) otherwise,
    # so the parallel grid axis shards rows across TensorCores (needed on v7x).
    return b if b <= 256 else 256


@jax.jit
def game_layer_forward(player, cards, fused):
    """player: (B, 8) f32, cards: (B, 5, 18) f32, fused: output of fuse_params."""
    b = player.shape[0]
    act_dtype = fused["w1"].dtype

    # activation slab: [cards | player | 1]  -- one input DMA instead of two
    ones = jnp.ones((b, 1), player.dtype)
    x = jnp.concatenate([cards.reshape(b, CF), player, ones], axis=1).astype(act_dtype)

    tb = _batch_tile(b)
    bp = pl.cdiv(b, tb) * tb
    if bp != b:
        x = jnp.pad(x, ((0, bp - b), (0, 0)))          # zero rows -> discarded below
    grid = (bp // tb,)

    out = pl.pallas_call(
        game_layer_kernel,
        out_shape=jax.ShapeDtypeStruct((bp, D_MODEL), jnp.float32),
        grid=grid,
        in_specs=[
            pl.BlockSpec((tb, X_COLS), lambda i: (i, 0)),        # activation tile
            pl.BlockSpec((X_COLS, S_COLS), lambda i: (0, 0)),    # W1 resident
            pl.BlockSpec((H_COLS, D_MODEL), lambda i: (0, 0)),   # W2 resident
        ],
        out_specs=pl.BlockSpec((tb, D_MODEL), lambda i: (i, 0)),
        compiler_params=pltpu.CompilerParams(dimension_semantics=("parallel",)),
    )(x, fused["w1"], fused["w2"])
    return out[:b]


# ------------------------------ param init (deterministic) ---------------------
def init_params(key):
    ks = jax.random.split(key, 8)
    s = 0.1
    return {
        "w_pe":  s * jax.random.normal(ks[0], (PLAYER_INFO_DIM, D_MODEL), jnp.float32),
        "b_pe":  s * jax.random.normal(ks[1], (1, D_MODEL), jnp.float32),
        "w_enc": s * jax.random.normal(ks[2], (CARD_INFO_DIM, D_MODEL), jnp.float32),
        "b_enc": s * jax.random.normal(ks[3], (1, D_MODEL), jnp.float32),
        "w_eff": s * jax.random.normal(ks[4], (EFFECT_INFO_DIM, D_MODEL), jnp.float32),
        "w_hid": s * jax.random.normal(ks[5], (D_MODEL, D_MODEL), jnp.float32),
        "b_hid": s * jax.random.normal(ks[6], (1, D_MODEL), jnp.float32),
        # flattened-card MLP weight (C*d, d), stored as (C, d, d)
        "w_mlp": s * jax.random.normal(ks[7], (MAX_CARDS, D_MODEL, D_MODEL), jnp.float32),
        "b_mlp": jnp.zeros((1, D_MODEL), jnp.float32),
    }


# ------------------------------ pure-JAX reference ------------------------------
def reference_forward(player, cards, p):
    b = player.shape[0]
    pe = player @ p["w_pe"] + p["b_pe"]
    card_info = cards[:, :, :CARD_INFO_DIM]
    eff = cards[:, :, CARD_INFO_DIM:].reshape(b * MAX_CARDS, MAX_EFFECTS, EFFECT_INFO_DIM)
    ce = card_info @ p["w_enc"] + p["b_enc"]
    ee = (eff @ p["w_eff"]).sum(axis=1).reshape(b, MAX_CARDS, D_MODEL)
    h = ce + ee
    h = jnp.maximum(h @ p["w_hid"] + p["b_hid"], 0.0)
    flat = h.reshape(b, MAX_CARDS * D_MODEL)
    w_mlp_flat = p["w_mlp"].reshape(MAX_CARDS * D_MODEL, D_MODEL)
    m = jnp.maximum(flat @ w_mlp_flat + p["b_mlp"], 0.0)
    return m + pe


# ----------------------------------- main ---------------------------------------
if __name__ == "__main__":
    key = jax.random.PRNGKey(0)
    k_p, k_c, k_w, k_p2, k_c2 = jax.random.split(key, 5)

    params = init_params(k_w)
    fused = jax.block_until_ready(fuse_params(params))   # one-time weight fusion

    # bf16 weights/activations with f32 accumulation -> relaxed tolerance
    ATOL, RTOL = 2e-2, 2e-2

    # --- primary check: tiny batch (single grid point) ---
    player = jax.random.normal(k_p, (B, PLAYER_INFO_DIM), jnp.float32)
    cards = jax.random.normal(k_c, (B, MAX_CARDS, CARD_FEAT), jnp.float32)
    out = jax.block_until_ready(game_layer_forward(player, cards, fused))
    ref = reference_forward(player, cards, params)
    assert out.shape == (B, D_MODEL)
    assert jnp.allclose(out, ref, atol=ATOL, rtol=RTOL), "mismatch vs reference (B=2)"

    # --- secondary check: larger batch exercises the parallel grid + padding path ---
    B2 = 300
    player2 = jax.random.normal(k_p2, (B2, PLAYER_INFO_DIM), jnp.float32)
    cards2 = jax.random.normal(k_c2, (B2, MAX_CARDS, CARD_FEAT), jnp.float32)
    out2 = jax.block_until_ready(game_layer_forward(player2, cards2, fused))
    ref2 = reference_forward(player2, cards2, params)
    assert out2.shape == (B2, D_MODEL)
    assert jnp.allclose(out2, ref2, atol=ATOL, rtol=RTOL), "mismatch vs reference (B=300)"

    print("KERNEL_OK")
</pallas_src>

<mosaic_0001>
module attributes {stable_mosaic.version = 11 : i64} {
  func.func @game_layer_kernel(%arg0: i32, %arg1: memref<2x99xbf16, #tpu.memory_space<vmem>>, %arg2: memref<99x320xbf16, #tpu.memory_space<vmem>>, %arg3: memref<192x32xbf16, #tpu.memory_space<vmem>>, %arg4: memref<2x32xf32, #tpu.memory_space<vmem>>) attributes {dimension_semantics = [#tpu.dimension_semantics<parallel>], iteration_bounds = array<i64: 1>, scalar_prefetch = 0 : i64, scratch_operands = 0 : i64, tpu.core_type = #tpu.core_type<tc>, window_params = [{transform_indices = @transform_0, window_bounds = array<i64: 2, 99>}, {pipeline_mode = #tpu.pipeline_mode<synchronous>, transform_indices = @transform_1, window_bounds = array<i64: 99, 320>}, {pipeline_mode = #tpu.pipeline_mode<synchronous>, transform_indices = @transform_2, window_bounds = array<i64: 192, 32>}, {transform_indices = @transform_3, window_bounds = array<i64: 2, 32>}]} {
    %c0 = arith.constant 0 : index
    %c0_0 = arith.constant 0 : index
    %0 = vector.load %arg1[%c0, %c0_0] : memref<2x99xbf16, #tpu.memory_space<vmem>>, vector<2x99xbf16>
    %c0_1 = arith.constant 0 : index
    %c0_2 = arith.constant 0 : index
    %1 = vector.load %arg2[%c0_1, %c0_2] : memref<99x320xbf16, #tpu.memory_space<vmem>>, vector<99x320xbf16>
    %cst = arith.constant dense<0.000000e+00> : vector<2x320xf32>
    %2 = tpu.matmul %0, %1, %cst {dimension_numbers = #tpu.dot_dimension_numbers<[1], [0], [0], [1], [0, 0, 1, 1], [], []>} : vector<2x99xbf16>, vector<99x320xbf16>, vector<2x320xf32> -> vector<2x320xf32>
    %3 = vector.extract_strided_slice %2 {offsets = [0, 0], sizes = [2, 32], strides = [1, 1]} : vector<2x320xf32> to vector<2x32xf32>
    %4 = vector.extract_strided_slice %2 {offsets = [0, 128], sizes = [2, 192], strides = [1, 1]} : vector<2x320xf32> to vector<2x192xf32>
    %cst_3 = arith.constant 0.000000e+00 : f32
    %5 = vector.broadcast %cst_3 : f32 to vector<2x192xf32>
    %6 = arith.maximumf %4, %5 : vector<2x192xf32>
    %7 = arith.truncf %6 : vector<2x192xf32> to vector<2x192xbf16>
    %c0_4 = arith.constant 0 : index
    %c0_5 = arith.constant 0 : index
    %8 = vector.load %arg3[%c0_4, %c0_5] : memref<192x32xbf16, #tpu.memory_space<vmem>>, vector<192x32xbf16>
    %cst_6 = arith.constant dense<0.000000e+00> : vector<2x32xf32>
    %9 = tpu.matmul %7, %8, %cst_6 {dimension_numbers = #tpu.dot_dimension_numbers<[1], [0], [0], [1], [0, 0, 1, 1], [], []>} : vector<2x192xbf16>, vector<192x32xbf16>, vector<2x32xf32> -> vector<2x32xf32>
    %cst_7 = arith.constant 0.000000e+00 : f32
    %10 = vector.broadcast %cst_7 : f32 to vector<2x32xf32>
    %11 = arith.maximumf %9, %10 : vector<2x32xf32>
    %12 = arith.addf %11, %3 : vector<2x32xf32>
    %c0_8 = arith.constant 0 : index
    %c0_9 = arith.constant 0 : index
    %13 = vector.load %arg4[%c0_8, %c0_9] : memref<2x32xf32, #tpu.memory_space<vmem>>, vector<2x32xf32>
    tpu.vector_store %arg4[%c0_8, %c0_9], %12 {strides = array<i32>} : memref<2x32xf32, #tpu.memory_space<vmem>>, vector<2x32xf32>,
    return
  }
  func.func @transform_0(%arg0: i32) -> (i32, i32) {
    %c0_i32 = arith.constant 0 : i32
    %c0_i32_0 = arith.constant 0 : i32
    return %arg0, %c0_i32 : i32, i32
  }
  func.func @transform_1(%arg0: i32) -> (i32, i32) {
    %c0_i32 = arith.constant 0 : i32
    %c0_i32_0 = arith.constant 0 : i32
    %c0_i32_1 = arith.constant 0 : i32
    return %c0_i32, %c0_i32_0 : i32, i32
  }
  func.func @transform_2(%arg0: i32) -> (i32, i32) {
    %c0_i32 = arith.constant 0 : i32
    %c0_i32_0 = arith.constant 0 : i32
    %c0_i32_1 = arith.constant 0 : i32
    return %c0_i32, %c0_i32_0 : i32, i32
  }
  func.func @transform_3(%arg0: i32) -> (i32, i32) {
    %c0_i32 = arith.constant 0 : i32
    %c0_i32_0 = arith.constant 0 : i32
    return %arg0, %c0_i32 : i32, i32
  }
}

</mosaic_0001>

<llo_original>
// kernel: game_layer_forward.1
$region0: #{game_layer_forward.1}
  #allocation0 [shape = 'u32[]', space=smem, size = 0x4, offset = 0x4, fixed_abs, tag = 'smem constant byte address 0x4 - core index']
  #allocation1 [shape = 'u32[144,128]{1,0:T(1,128)}', space=vmem, size = 0x12000, scoped, tag = 'internal scratch']
  %s0 = inlined_call_operand.vmem [shape: bf16[2,99], index: 0, kind: input, shape index: {}]
  %s1 = inlined_call_operand.vmem [shape: bf16[99,320], index: 1, kind: input, shape index: {}]
  %s2 = inlined_call_operand.vmem [shape: bf16[192,32], index: 2, kind: input, shape index: {}]
  %s3 = inlined_call_operand.hbm [shape: f32[2,32], index: 3, kind: output, shape index: {}]
  %s4 = sld [smem:[#allocation0]]
  $region22: #{game_layer_forward.1} parent=0
    _
  %s6 = ssub.s32 1, %s4
  %s7 = scalar_select 0, %s6, %s4
  $region1: #{game_layer_forward.1} parent=0
    #allocation2 [shape = 'u8[1024]{0}', space=vmem, size = 0x400, scoped, tag = 'output window, operand 0, single buffered']
    #allocation3 [shape = 's32[1]{0}', space=sflag, size = 0x4, scoped, tag = 'scoped memory for game_layer_forward.1']
    %8 = vsyncpa [#allocation3], 0
    // Predicated region
    $region2: #{game_layer_forward.1} parent=1 // pred_check
      _
    $region3: #{game_layer_forward.1} parent=1 // pred_check_branch
      %10 = sbr.rel (0) target = $region5
    $region4: #{game_layer_forward.1} parent=1 // pred_region
      _
    $region5: #{game_layer_forward.1} parent=1 // pred_fallthru
      _
    // Predicated region
    $region6: #{game_layer_forward.1} parent=1 // pred_check
      _
    $region7: #{game_layer_forward.1} parent=1 // pred_check_branch
      %12 = sbr.rel (0) target = $region9
    $region8: #{game_layer_forward.1} parent=1 // pred_region
      _
    $region9: #{game_layer_forward.1} parent=1 // pred_fallthru
      _
    // Predicated region
    $region10: #{game_layer_forward.1} parent=1 // pred_check
      _
    $region11: #{game_layer_forward.1} parent=1 // pred_check_branch
      %14 = sbr.rel (0) target = $region13
    $region12: #{game_layer_forward.1} parent=1 // pred_region
      _
    $region13: #{game_layer_forward.1} parent=1 // pred_fallthru
      _
    %v16 = vld [vmem:[%s0] sm:$0x1]
    %v17 = vld [vmem:[%s1] sm:$0xff]
    %v18 = vld [vmem:[%s1 + $0x8] sm:$0xf]
    %v19 = vld [vmem:[%s1 + $0xc] sm:$0xff]
    %v20 = vld [vmem:[%s1 + $0x14] sm:$0xf]
    %v21 = vld [vmem:[%s1 + $0x18] sm:$0xff]
    %v22 = vld [vmem:[%s1 + $0x20] sm:$0xf]
    %v23 = vld [vmem:[%s1 + $0x24] sm:$0xff]
    %v24 = vld [vmem:[%s1 + $0x2c] sm:$0xf]
    %v25 = vld [vmem:[%s1 + $0x30] sm:$0xff]
    %v26 = vld [vmem:[%s1 + $0x38] sm:$0xf]
    %v27 = vld [vmem:[%s1 + $0x3c] sm:$0xff]
    %v28 = vld [vmem:[%s1 + $0x44] sm:$0xf]
    %v29 = vld [vmem:[%s1 + $0x48] sm:$0xff]
    %v30 = vld [vmem:[%s1 + $0x50] sm:$0xf]
    %v31 = vld [vmem:[%s1 + $0x54] sm:$0xff]
    %v32 = vld [vmem:[%s1 + $0x5c] sm:$0xf]
    %v33 = vld [vmem:[%s1 + $0x60] sm:$0xff]
    %v34 = vld [vmem:[%s1 + $0x68] sm:$0xf]
    %v35 = vld [vmem:[%s1 + $0x6c] sm:$0xff]
    %v36 = vld [vmem:[%s1 + $0x74] sm:$0xf]
    %v37 = vld [vmem:[%s1 + $0x78] sm:$0xff]
    %v38 = vld [vmem:[%s1 + $0x80] sm:$0xf]
    %v39 = vld [vmem:[%s1 + $0x84] sm:$0xff]
    %v40 = vld [vmem:[%s1 + $0x8c] sm:$0xf]
    %v41 = vld [vmem:[%s1 + $0x90] sm:$0x33]
    %v42 = vld [vmem:[%s1 + $0x98] sm:$0x3]
    %v69 = vunpack.c.l.b16 %v17
    %v70 = vunpack.c.h.b16 %v17
    %v71 = vunpack.c.l.b16 %v18
    %v72 = vunpack.c.l.b16 %v19
    %v73 = vunpack.c.h.b16 %v19
    %v74 = vunpack.c.l.b16 %v20
    %v75 = vunpack.c.l.b16 %v21
    %v76 = vunpack.c.h.b16 %v21
    %v77 = vunpack.c.l.b16 %v22
    %v78 = vunpack.c.l.b16 %v23
    %v79 = vunpack.c.h.b16 %v23
    %v80 = vunpack.c.l.b16 %v24
    %v81 = vunpack.c.l.b16 %v25
    %v82 = vunpack.c.h.b16 %v25
    %v83 = vunpack.c.l.b16 %v26
    %v84 = vunpack.c.l.b16 %v27
    %v85 = vunpack.c.h.b16 %v27
    %v86 = vunpack.c.l.b16 %v28
    %v87 = vunpack.c.l.b16 %v29
    %v88 = vunpack.c.h.b16 %v29
    %v89 = vunpack.c.l.b16 %v30
    %v90 = vunpack.c.l.b16 %v31
    %v91 = vunpack.c.h.b16 %v31
    %v92 = vunpack.c.l.b16 %v32
    %v93 = vunpack.c.l.b16 %v33
    %v94 = vunpack.c.h.b16 %v33
    %v95 = vunpack.c.l.b16 %v34
    %v96 = vunpack.c.l.b16 %v35
    %v97 = vunpack.c.h.b16 %v35
    %v98 = vunpack.c.l.b16 %v36
    %v99 = vunpack.c.l.b16 %v37
    %v100 = vunpack.c.h.b16 %v37
    %v101 = vunpack.c.l.b16 %v38
    %v102 = vunpack.c.l.b16 %v39
    %v103 = vunpack.c.h.b16 %v39
    %v104 = vunpack.c.l.b16 %v40
    %v105 = vunpack.c.l.b16 %v41
    %v106 = vunpack.c.h.b16 %v41
    %v107 = vunpack.c.l.b16 %v42
    %v108 = vpack.c.b16 %v72, %v69
    %v109 = vpack.c.b16 %v73, %v70
    %v110 = vpack.c.b16 %v74, %v71
    %v111 = vpack.c.b16 %v78, %v75
    %v112 = vpack.c.b16 %v79, %v76
    %v113 = vpack.c.b16 %v80, %v77
    %v114 = vpack.c.b16 %v84, %v81
    %v115 = vpack.c.b16 %v85, %v82
    %v116 = vpack.c.b16 %v86, %v83
    %v117 = vpack.c.b16 %v90, %v87
    %v118 = vpack.c.b16 %v91, %v88
    %v119 = vpack.c.b16 %v92, %v89
    %v120 = vpack.c.b16 %v96, %v93
    %v121 = vpack.c.b16 %v97, %v94
    %v122 = vpack.c.b16 %v98, %v95
    %v123 = vpack.c.b16 %v102, %v99
    %v124 = vpack.c.b16 %v103, %v100
    %v125 = vpack.c.b16 %v104, %v101
    %v126 = vpack.c.b16 %v105, %v105
    %v127 = vpack.c.b16 %v106, %v106
    %v128 = vpack.c.b16 %v107, %v107
    %vm147 = vcmask 809984
    %v149 = vsel %vm147, %v16, 0
    %vm151 = vcmask 1040384
    %vm152 = vcmask 1041408
    %v153 = vsel %vm151, 4294967295, 65535
    %v154 = vsel %vm152, %v153, 0
    %v156 = vand.u32 %v126, %v154
    %v159 = vand.u32 %v127, %v154
    %v162 = vand.u32 %v128, %v154
    %164 = vmatprep.subr.bf16.mxu0 %v109
    %165 = vmatpush1.bf16.msra.mxu0 %v108
    %166 = vmatprep.subr.bf16.mxu0 %v112
    %167 = vmatpush1.bf16.msra.mxu0 %v111
    %168 = vmatprep.subr.bf16.mxu0 %v115
    %169 = vmatpush1.bf16.msra.mxu0 %v114
    %170 = vmatprep.subr.bf16.mxu0 %v118
    %171 = vmatpush1.bf16.msra.mxu0 %v117
    %172 = vmatprep.subr.bf16.mxu0 %v121
    %173 = vmatpush1.bf16.msra.mxu0 %v120
    %174 = vmatprep.subr.bf16.mxu0 %v124
    %175 = vmatpush1.bf16.msra.mxu0 %v123
    %176 = vmatprep.subr.bf16.mxu0 %v159
    %177 = vmatpush1.bf16.msra.mxu0 %v156
    %178 = vmatprep.subr.bf16.mxu0 0
    %179 = vmatpush1.bf16.msra.mxu0 0
    %180 = vmatprep.subr.bf16.mxu0 0
    %181 = vmatpush1.bf16.msra.mxu0 0
    %182 = vmatprep.subr.bf16.mxu0 0
    %183 = vmatpush1.bf16.msra.mxu0 0
    %184 = vmatprep.subr.bf16.mxu0 0
    %185 = vmatpush1.bf16.msra.mxu0 0
    %186 = vmatprep.subr.bf16.mxu0 0
    %187 = vmatpush1.bf16.msra.mxu0 0
    %188 = vmatprep.subr.bf16.mxu0 0
    %189 = vmatpush1.bf16.msra.mxu0 0
    %190 = vmatprep.subr.bf16.mxu0 0
    %191 = vmatpush1.bf16.msra.mxu0 0
    %192 = vmatprep.subr.bf16.mxu0 0
    %193 = vmatpush1.bf16.msra.mxu0 0
    %194 = vmatprep.subr.bf16.mxu0 0
    %195 = vmatpush1.bf16.msra.mxu0 0
    %196 = vmatprep.mubr.bf16.mxu0 0
    %197 = vmatmul.mubr.bf16.gmra.mrb[0].mxu0 %v149
    %v198 = vpop.f32.mrb[0].mxu0
    %v199 = vadd.f32 0.0, %v198
    %v200 = vpop.f32.mrb[0].mxu0
    %v201 = vadd.f32 0.0, %v200
    %v202 = vpop.f32.mrb[0].mxu0
    %v203 = vpop.f32.mrb[0].mxu0
    %204 = vdwg.mxu0
    %205 = vmatprep.subr.bf16.mxu0 0
    %206 = vmatpush1.bf16.msra.mxu0 %v110
    %207 = vmatprep.subr.bf16.mxu0 0
    %208 = vmatpush1.bf16.msra.mxu0 %v113
    %209 = vmatprep.subr.bf16.mxu0 0
    %210 = vmatpush1.bf16.msra.mxu0 %v116
    %211 = vmatprep.subr.bf16.mxu0 0
    %212 = vmatpush1.bf16.msra.mxu0 %v119
    %213 = vmatprep.subr.bf16.mxu0 0
    %214 = vmatpush1.bf16.msra.mxu0 %v122
    %215 = vmatprep.subr.bf16.mxu0 0
    %216 = vmatpush1.bf16.msra.mxu0 %v125
    %217 = vmatprep.subr.bf16.mxu0 0
    %218 = vmatpush1.bf16.msra.mxu0 %v162
    %219 = vmatprep.subr.bf16.mxu0 0
    %220 = vmatpush1.bf16.msra.mxu0 0
    %221 = vmatprep.subr.bf16.mxu0 0
    %222 = vmatpush1.bf16.msra.mxu0 0
    %223 = vmatprep.subr.bf16.mxu0 0
    %224 = vmatpush1.bf16.msra.mxu0 0
    %225 = vmatprep.subr.bf16.mxu0 0
    %226 = vmatpush1.bf16.msra.mxu0 0
    %227 = vmatprep.subr.bf16.mxu0 0
    %228 = vmatpush1.bf16.msra.mxu0 0
    %229 = vmatprep.subr.bf16.mxu0 0
    %230 = vmatpush1.bf16.msra.mxu0 0
    %231 = vmatprep.subr.bf16.mxu0 0
    %232 = vmatpush1.bf16.msra.mxu0 0
    %233 = vmatprep.subr.bf16.mxu0 0
    %234 = vmatpush1.bf16.msra.mxu0 0
    %235 = vmatprep.subr.bf16.mxu0 0
    %236 = vmatpush1.bf16.msra.mxu0 0
    %237 = vmatprep.mubr.bf16.mxu0 0
    %238 = vmatmul.mubr.bf16.gmra.mrb[0].mxu0 %v149
    %v239 = vpop.f32.mrb[0].mxu0
    %v240 = vadd.f32 0.0, %v239
    %v241 = vpop.f32.mrb[0].mxu0
    %v242 = vpop.f32.mrb[0].mxu0
    %v243 = vpop.f32.mrb[0].mxu0
    %244 = vdwg.mxu0
    %v245 = vmax.f32 %v201, 0.0
    %v246 = vmax.f32 %v240, 0.0
    %v247 = vpack.c.bf16 %v245, %v245
    %v248 = vpack.c.bf16 %v246, %v246
    %v249 = vld [vmem:[%s2] sm:$0xf]
    %v250 = vld [vmem:[%s2 + $0x4] sm:$0xf]
    %v251 = vld [vmem:[%s2 + $0x8] sm:$0xf]
    %v252 = vld [vmem:[%s2 + $0xc] sm:$0xf]
    %v253 = vld [vmem:[%s2 + $0x10] sm:$0xf]
    %v254 = vld [vmem:[%s2 + $0x14] sm:$0xf]
    %v255 = vld [vmem:[%s2 + $0x18] sm:$0xf]
    %v256 = vld [vmem:[%s2 + $0x1c] sm:$0xf]
    %v257 = vld [vmem:[%s2 + $0x20] sm:$0xf]
    %v258 = vld [vmem:[%s2 + $0x24] sm:$0xf]
    %v259 = vld [vmem:[%s2 + $0x28] sm:$0xf]
    %v260 = vld [vmem:[%s2 + $0x2c] sm:$0xf]
    %v261 = vld [vmem:[%s2 + $0x30] sm:$0xf]
    %v262 = vld [vmem:[%s2 + $0x34] sm:$0xf]
    %v263 = vld [vmem:[%s2 + $0x38] sm:$0xf]
    %v264 = vld [vmem:[%s2 + $0x3c] sm:$0xf]
    %v265 = vld [vmem:[%s2 + $0x40] sm:$0xf]
    %v266 = vld [vmem:[%s2 + $0x44] sm:$0xf]
    %v267 = vld [vmem:[%s2 + $0x48] sm:$0xf]
    %v268 = vld [vmem:[%s2 + $0x4c] sm:$0xf]
    %v269 = vld [vmem:[%s2 + $0x50] sm:$0xf]
    %v270 = vld [vmem:[%s2 + $0x54] sm:$0xf]
    %v271 = vld [vmem:[%s2 + $0x58] sm:$0xf]
    %v272 = vld [vmem:[%s2 + $0x5c] sm:$0xf]
    %v297 = vunpack.c.l.b16 %v249
    %v298 = vunpack.c.l.b16 %v250
    %v299 = vunpack.c.l.b16 %v251
    %v300 = vunpack.c.l.b16 %v252
    %v301 = vunpack.c.l.b16 %v253
    %v302 = vunpack.c.l.b16 %v254
    %v303 = vunpack.c.l.b16 %v255
    %v304 = vunpack.c.l.b16 %v256
    %v305 = vunpack.c.l.b16 %v257
    %v306 = vunpack.c.l.b16 %v258
    %v307 = vunpack.c.l.b16 %v259
    %v308 = vunpack.c.l.b16 %v260
    %v309 = vunpack.c.l.b16 %v261
    %v310 = vunpack.c.l.b16 %v262
    %v311 = vunpack.c.l.b16 %v263
    %v312 = vunpack.c.l.b16 %v264
    %v313 = vunpack.c.l.b16 %v265
    %v314 = vunpack.c.l.b16 %v266
    %v315 = vunpack.c.l.b16 %v267
    %v316 = vunpack.c.l.b16 %v268
    %v317 = vunpack.c.l.b16 %v269
    %v318 = vunpack.c.l.b16 %v270
    %v319 = vunpack.c.l.b16 %v271
    %v320 = vunpack.c.l.b16 %v272
    %v321 = vpack.c.b16 %v298, %v297
    %v322 = vpack.c.b16 %v300, %v299
    %v323 = vpack.c.b16 %v302, %v301
    %v324 = vpack.c.b16 %v304, %v303
    %v325 = vpack.c.b16 %v306, %v305
    %v326 = vpack.c.b16 %v308, %v307
    %v327 = vpack.c.b16 %v310, %v309
    %v328 = vpack.c.b16 %v312, %v311
    %v329 = vpack.c.b16 %v314, %v313
    %v330 = vpack.c.b16 %v316, %v315
    %v331 = vpack.c.b16 %v318, %v317
    %v332 = vpack.c.b16 %v320, %v319
    %vm345 = vcmask 523264
    %v347 = vsel %vm345, %v248, 0
    %349 = vmatprep.subr.bf16.mxu0 0
    %350 = vmatpush1.bf16.msra.mxu0 %v321
    %351 = vmatprep.subr.bf16.mxu0 0
    %352 = vmatpush1.bf16.msra.mxu0 %v322
    %353 = vmatprep.subr.bf16.mxu0 0
    %354 = vmatpush1.bf16.msra.mxu0 %v323
    %355 = vmatprep.subr.bf16.mxu0 0
    %356 = vmatpush1.bf16.msra.mxu0 %v324
    %357 = vmatprep.subr.bf16.mxu0 0
    %358 = vmatpush1.bf16.msra.mxu0 %v325
    %359 = vmatprep.subr.bf16.mxu0 0
    %360 = vmatpush1.bf16.msra.mxu0 %v326
    %361 = vmatprep.subr.bf16.mxu0 0
    %362 = vmatpush1.bf16.msra.mxu0 %v327
    %363 = vmatprep.subr.bf16.mxu0 0
    %364 = vmatpush1.bf16.msra.mxu0 %v328
    %365 = vmatprep.subr.bf16.mxu0 0
    %366 = vmatpush1.bf16.msra.mxu0 %v329
    %367 = vmatprep.subr.bf16.mxu0 0
    %368 = vmatpush1.bf16.msra.mxu0 %v330
    %369 = vmatprep.subr.bf16.mxu0 0
    %370 = vmatpush1.bf16.msra.mxu0 %v331
    %371 = vmatprep.subr.bf16.mxu0 0
    %372 = vmatpush1.bf16.msra.mxu0 %v332
    %373 = vmatprep.subr.bf16.mxu0 0
    %374 = vmatpush1.bf16.msra.mxu0 0
    %375 = vmatprep.subr.bf16.mxu0 0
    %376 = vmatpush1.bf16.msra.mxu0 0
    %377 = vmatprep.subr.bf16.mxu0 0
    %378 = vmatpush1.bf16.msra.mxu0 0
    %379 = vmatprep.subr.bf16.mxu0 0
    %380 = vmatpush1.bf16.msra.mxu0 0
    %381 = vmatprep.mubr.bf16.mxu0 %v347
    %382 = vmatmul.mubr.bf16.gmra.mrb[0].mxu0 %v247
    %v383 = vpop.f32.mrb[0].mxu0
    %v384 = vadd.f32 0.0, %v383
    %v385 = vpop.f32.mrb[0].mxu0
    %v386 = vpop.f32.mrb[0].mxu0
    %v387 = vpop.f32.mrb[0].mxu0
    %388 = vdwg.mxu0
    %v389 = vmax.f32 %v384, 0.0
    %v390 = vadd.f32 %v389, %v199
    %vm391 = vcmask 254976
    %392 = vst.msk [vmem:[#allocation2] sm:$0x3] %vm391, %v390
    // Predicated region
    $region14: #{game_layer_forward.1} parent=1 // pred_check
      _
    $region15: #{game_layer_forward.1} parent=1 // pred_check_branch
      %394 = sbr.rel (0) target = $region17
    $region16: #{game_layer_forward.1} parent=1 // pred_region
      %s396 = ssub.s32 32, 32
      %397 = vsyncadd [#allocation3], %s396
      %s399 = sshll.u32 [#allocation2], 4
      %s400 = int_to_ptr.vmem [resolvable:$true] %s399
      %402 = dma.vmem_to_hbm [thread:$0]  %s400, 32, %s3, [#allocation3]
    $region17: #{game_layer_forward.1} parent=1 // pred_fallthru
      _
    // Predicated region
    $region18: #{game_layer_forward.1} parent=1 // pred_check
      _
    $region19: #{game_layer_forward.1} parent=1 // pred_check_branch
      %404 = sbr.rel (0) target = $region21
    $region20: #{game_layer_forward.1} parent=1 // pred_region
      %405 = dma.done [#allocation3], 32
    $region21: #{game_layer_forward.1} parent=1 // pred_fallthru
      _
    %406 = vsyncpa [#allocation3], 1

</llo_original>
